<compile_context>
chip_gen: v7x
topology: tpu7x:2x2x1
jax: 0.10.0
libtpu: 0.0.40
codegen_flags: <defaults>
</compile_context>

<pallas_src>
import functools

import numpy as np
import jax
import jax.numpy as jnp
from jax.experimental import pallas as pl
from jax.experimental.pallas import tpu as pltpu


# ---------------------------------------------------------------------------
# Pooling-matrix construction (cached).
# Column j of W averages the input window [floor(j*L/out), ceil((j+1)*L/out)),
# exactly F.adaptive_avg_pool1d's window rule.
# ---------------------------------------------------------------------------
@functools.lru_cache(maxsize=None)
def _adaptive_pool_matrix_np(in_len: int, out_len: int) -> np.ndarray:
    w = np.zeros((in_len, out_len), dtype=np.float32)
    for j in range(out_len):
        start = (j * in_len) // out_len
        end = -((-(j + 1) * in_len) // out_len)  # ceil((j+1)*in_len / out_len)
        w[start:end, j] = 1.0 / float(end - start)
    return w


_W_DEVICE_CACHE = {}


def _pool_matrix(in_len: int, out_len: int, dtype) -> jax.Array:
    key = (in_len, out_len, jnp.dtype(dtype).name)
    w = _W_DEVICE_CACHE.get(key)
    if w is None:
        w = jnp.asarray(_adaptive_pool_matrix_np(in_len, out_len), dtype=dtype)
        _W_DEVICE_CACHE[key] = w
    return w


# ---------------------------------------------------------------------------
# Fused kernel: all scales in one body, one lane-dense store per B-tile.
# refs = (f_0 .. f_{S-1}, w_0 .. w_{S-1}, o_ref)
# ---------------------------------------------------------------------------
def _preprocessing_kernel(*refs, num_scales: int):
    f_refs = refs[:num_scales]
    w_refs = refs[num_scales:2 * num_scales]
    o_ref = refs[2 * num_scales]

    parts = [
        jnp.dot(f_refs[i][...], w_refs[i][...],
                preferred_element_type=jnp.float32)
        for i in range(num_scales)
    ]
    block = parts[0] if num_scales == 1 else jnp.concatenate(parts, axis=-1)
    o_ref[...] = block.astype(o_ref.dtype)


def preprocessing_forward(features, output_dim: int, *, tile_b: int | None = None) -> jax.Array:
    """Pallas equivalent of Preprocessing.forward.

    features: list of arrays, features[i] has shape (B, input_dims[i]).
    returns:  (B, len(features), output_dim)
    """
    dtype = jnp.asarray(features[0]).dtype
    features = [jnp.asarray(f).astype(dtype) for f in features]
    num_scales = len(features)
    b = int(features[0].shape[0])
    lens = [int(f.shape[1]) for f in features]
    itemsize = jnp.dtype(dtype).itemsize

    ws = [_pool_matrix(l, output_dim, dtype) for l in lens]

    # --- pick the batch (patch) tile against a conservative VMEM budget ---------
    sum_l = sum(lens)
    sum_lw = sum(l * output_dim for l in lens)
    row_bytes = (sum_l + num_scales * output_dim) * itemsize      # streamed per row
    w_bytes = 2 * sum_lw * itemsize                               # resident pooling mats
    budget = 24 * 1024 * 1024                                     # safe on v5e/v6e/v7x
    if tile_b is None:
        tile_b = 8
        for cand in (1024, 512, 256, 128, 64, 32, 16, 8):
            if 2 * cand * row_bytes + w_bytes <= budget:
                tile_b = cand
                break
    # never (much) larger than the batch; always a multiple of 8 (sublanes)
    tile_b = max(8, min(int(tile_b), ((b + 7) // 8) * 8))
    tile_b = max(8, (tile_b // 8) * 8)

    grid = (pl.cdiv(b, tile_b),)

    in_specs = []
    for l in lens:                                   # streamed feature tiles
        in_specs.append(pl.BlockSpec((tile_b, l), lambda i: (i, 0)))
    for l in lens:                                   # VMEM-resident pooling matrices
        in_specs.append(pl.BlockSpec((l, output_dim), lambda i: (0, 0)))

    out_specs = pl.BlockSpec((tile_b, num_scales * output_dim), lambda i: (i, 0))

    flops = 2 * b * sum_lw
    bytes_accessed = (b * sum_l + sum_lw + b * num_scales * output_dim) * itemsize

    kernel = functools.partial(_preprocessing_kernel, num_scales=num_scales)

    out_flat = pl.pallas_call(
        kernel,
        out_shape=jax.ShapeDtypeStruct((b, num_scales * output_dim), dtype),
        grid_spec=pltpu.PrefetchScalarGridSpec(
            num_scalar_prefetch=0,
            grid=grid,
            in_specs=in_specs,
            out_specs=out_specs,
        ),
        compiler_params=pltpu.CompilerParams(
            dimension_semantics=("parallel",),
            vmem_limit_bytes=48 * 1024 * 1024,
        ),
        cost_estimate=pl.CostEstimate(
            flops=flops, transcendentals=0, bytes_accessed=bytes_accessed),
    )(*features, *ws)

    # Free reshape: (B, S*out) -> (B, S, out) == torch.stack(..., dim=1).
    return out_flat.reshape(b, num_scales, output_dim)


# ---------------------------------------------------------------------------
# Pure numpy reference of adaptive_avg_pool1d + stack semantics (for checking).
# ---------------------------------------------------------------------------
def _reference(features, output_dim: int) -> np.ndarray:
    outs = []
    for f in features:
        f = np.asarray(f, dtype=np.float32)
        b, l = f.shape
        o = np.zeros((b, output_dim), dtype=np.float32)
        for j in range(output_dim):
            start = (j * l) // output_dim
            end = -((-(j + 1) * l) // output_dim)
            o[:, j] = f[:, start:end].mean(axis=1)
        outs.append(o)
    return np.stack(outs, axis=1)


if __name__ == "__main__":
    # --- Test 1: small shapes, lane-dense fused output (2 * 64 = 128 lanes) ----
    batch, input_dims, output_dim = 8, [96, 160], 64
    keys = jax.random.split(jax.random.PRNGKey(0), len(input_dims))
    feats = [jax.random.normal(k, (batch, d), dtype=jnp.float32)
             for k, d in zip(keys, input_dims)]

    out = jax.block_until_ready(preprocessing_forward(feats, output_dim))
    assert out.shape == (batch, len(input_dims), output_dim), out.shape
    np.testing.assert_allclose(np.asarray(out), _reference(feats, output_dim),
                               rtol=1e-5, atol=1e-5)

    # --- Test 2: multi-tile grid with ragged last tile + ragged pool windows ----
    batch2, input_dims2, output_dim2 = 300, [100, 156, 212], 64
    keys2 = jax.random.split(jax.random.PRNGKey(1), len(input_dims2))
    feats2 = [jax.random.normal(k, (batch2, d), dtype=jnp.float32)
              for k, d in zip(keys2, input_dims2)]
    out2 = jax.block_until_ready(
        preprocessing_forward(feats2, output_dim2, tile_b=128))
    assert out2.shape == (batch2, len(input_dims2), output_dim2), out2.shape
    np.testing.assert_allclose(np.asarray(out2), _reference(feats2, output_dim2),
                               rtol=1e-5, atol=1e-5)

    # --- Test 3: bf16 features (bf16 MXU operands, f32 accumulation) -----------
    feats_bf16 = [f.astype(jnp.bfloat16) for f in feats]
    out_bf16 = jax.block_until_ready(preprocessing_forward(feats_bf16, output_dim))
    ref_bf16 = _reference([f.astype(jnp.float32) for f in feats_bf16], output_dim)
    np.testing.assert_allclose(np.asarray(out_bf16.astype(jnp.float32)), ref_bf16,
                               rtol=5e-2, atol=5e-2)

    print("KERNEL_OK")
</pallas_src>

<mosaic_0001>
module attributes {stable_mosaic.version = 11 : i64} {
  func.func @_preprocessing_kernel(%arg0: i32, %arg1: memref<8x96xf32, #tpu.memory_space<vmem>>, %arg2: memref<8x160xf32, #tpu.memory_space<vmem>>, %arg3: memref<96x64xf32, #tpu.memory_space<vmem>>, %arg4: memref<160x64xf32, #tpu.memory_space<vmem>>, %arg5: memref<8x128xf32, #tpu.memory_space<vmem>>) attributes {dimension_semantics = [#tpu.dimension_semantics<parallel>], iteration_bounds = array<i64: 1>, scalar_prefetch = 0 : i64, scratch_operands = 0 : i64, tpu.core_type = #tpu.core_type<tc>, window_params = [{transform_indices = @transform_0, window_bounds = array<i64: 8, 96>}, {transform_indices = @transform_1, window_bounds = array<i64: 8, 160>}, {pipeline_mode = #tpu.pipeline_mode<synchronous>, transform_indices = @transform_2, window_bounds = array<i64: 96, 64>}, {pipeline_mode = #tpu.pipeline_mode<synchronous>, transform_indices = @transform_3, window_bounds = array<i64: 160, 64>}, {transform_indices = @transform_4, window_bounds = array<i64: 8, 128>}]} {
    %c0 = arith.constant 0 : index
    %c0_0 = arith.constant 0 : index
    %0 = vector.load %arg1[%c0, %c0_0] : memref<8x96xf32, #tpu.memory_space<vmem>>, vector<8x96xf32>
    %c0_1 = arith.constant 0 : index
    %c0_2 = arith.constant 0 : index
    %1 = vector.load %arg3[%c0_1, %c0_2] : memref<96x64xf32, #tpu.memory_space<vmem>>, vector<96x64xf32>
    %cst = arith.constant dense<0.000000e+00> : vector<8x64xf32>
    %2 = tpu.matmul %0, %1, %cst {dimension_numbers = #tpu.dot_dimension_numbers<[1], [0], [0], [1], [0, 0, 1, 1], [], []>} : vector<8x96xf32>, vector<96x64xf32>, vector<8x64xf32> -> vector<8x64xf32>
    %c0_3 = arith.constant 0 : index
    %c0_4 = arith.constant 0 : index
    %3 = vector.load %arg2[%c0_3, %c0_4] : memref<8x160xf32, #tpu.memory_space<vmem>>, vector<8x160xf32>
    %c0_5 = arith.constant 0 : index
    %c0_6 = arith.constant 0 : index
    %4 = vector.load %arg4[%c0_5, %c0_6] : memref<160x64xf32, #tpu.memory_space<vmem>>, vector<160x64xf32>
    %cst_7 = arith.constant dense<0.000000e+00> : vector<8x64xf32>
    %5 = tpu.matmul %3, %4, %cst_7 {dimension_numbers = #tpu.dot_dimension_numbers<[1], [0], [0], [1], [0, 0, 1, 1], [], []>} : vector<8x160xf32>, vector<160x64xf32>, vector<8x64xf32> -> vector<8x64xf32>
    %6 = tpu.concatenate %2, %5 in 1 : vector<8x64xf32>, vector<8x64xf32> -> vector<8x128xf32>
    %c0_8 = arith.constant 0 : index
    %c0_9 = arith.constant 0 : index
    %7 = vector.load %arg5[%c0_8, %c0_9] : memref<8x128xf32, #tpu.memory_space<vmem>>, vector<8x128xf32>
    tpu.vector_store %arg5[%c0_8, %c0_9], %6 {strides = array<i32>} : memref<8x128xf32, #tpu.memory_space<vmem>>, vector<8x128xf32>,
    return
  }
  func.func @transform_0(%arg0: i32) -> (i32, i32) {
    %c0_i32 = arith.constant 0 : i32
    %c0_i32_0 = arith.constant 0 : i32
    return %arg0, %c0_i32 : i32, i32
  }
  func.func @transform_1(%arg0: i32) -> (i32, i32) {
    %c0_i32 = arith.constant 0 : i32
    %c0_i32_0 = arith.constant 0 : i32
    return %arg0, %c0_i32 : i32, i32
  }
  func.func @transform_2(%arg0: i32) -> (i32, i32) {
    %c0_i32 = arith.constant 0 : i32
    %c0_i32_0 = arith.constant 0 : i32
    %c0_i32_1 = arith.constant 0 : i32
    return %c0_i32, %c0_i32_0 : i32, i32
  }
  func.func @transform_3(%arg0: i32) -> (i32, i32) {
    %c0_i32 = arith.constant 0 : i32
    %c0_i32_0 = arith.constant 0 : i32
    %c0_i32_1 = arith.constant 0 : i32
    return %c0_i32, %c0_i32_0 : i32, i32
  }
  func.func @transform_4(%arg0: i32) -> (i32, i32) {
    %c0_i32 = arith.constant 0 : i32
    %c0_i32_0 = arith.constant 0 : i32
    return %arg0, %c0_i32 : i32, i32
  }
}

</mosaic_0001>

<llo_original>
// kernel: tpu_custom_call.1
$region0: #{tpu_custom_call.1}
  #allocation0 [shape = 'u32[]', space=smem, size = 0x4, offset = 0x4, fixed_abs, tag = 'smem constant byte address 0x4 - core index']
  #allocation1 [shape = 'u32[144,128]{1,0:T(1,128)}', space=vmem, size = 0x12000, scoped, tag = 'internal scratch']
  %s0 = inlined_call_operand.vmem [shape: f32[8,96], index: 0, kind: input, shape index: {}]
  %s1 = inlined_call_operand.vmem [shape: f32[8,160], index: 1, kind: input, shape index: {}]
  %s2 = inlined_call_operand.vmem [shape: f32[96,64], index: 2, kind: input, shape index: {}]
  %s3 = inlined_call_operand.vmem [shape: f32[160,64], index: 3, kind: input, shape index: {}]
  %s4 = inlined_call_operand.hbm [shape: f32[8,128], index: 4, kind: output, shape index: {}]
  %s5 = sld [smem:[#allocation0]]
  $region26: #{tpu_custom_call.1} parent=0
    _
  %s7 = ssub.s32 1, %s5
  %s8 = scalar_select 0, %s7, %s5
  $region1: #{tpu_custom_call.1} parent=0
    #allocation2 [shape = 'u8[4096]{0}', space=vmem, size = 0x1000, scoped, tag = 'output window, operand 0, single buffered']
    #allocation3 [shape = 's32[1]{0}', space=sflag, size = 0x4, scoped, tag = 'scoped memory for tpu_custom_call.1']
    %9 = vsyncpa [#allocation3], 0
    // Predicated region
    $region2: #{tpu_custom_call.1} parent=1 // pred_check
      _
    $region3: #{tpu_custom_call.1} parent=1 // pred_check_branch
      %11 = sbr.rel (0) target = $region5
    $region4: #{tpu_custom_call.1} parent=1 // pred_region
      _
    $region5: #{tpu_custom_call.1} parent=1 // pred_fallthru
      _
    // Predicated region
    $region6: #{tpu_custom_call.1} parent=1 // pred_check
      _
    $region7: #{tpu_custom_call.1} parent=1 // pred_check_branch
      %13 = sbr.rel (0) target = $region9
    $region8: #{tpu_custom_call.1} parent=1 // pred_region
      _
    $region9: #{tpu_custom_call.1} parent=1 // pred_fallthru
      _
    // Predicated region
    $region10: #{tpu_custom_call.1} parent=1 // pred_check
      _
    $region11: #{tpu_custom_call.1} parent=1 // pred_check_branch
      %15 = sbr.rel (0) target = $region13
    $region12: #{tpu_custom_call.1} parent=1 // pred_region
      _
    $region13: #{tpu_custom_call.1} parent=1 // pred_fallthru
      _
    // Predicated region
    $region14: #{tpu_custom_call.1} parent=1 // pred_check
      _
    $region15: #{tpu_custom_call.1} parent=1 // pred_check_branch
      %17 = sbr.rel (0) target = $region17
    $region16: #{tpu_custom_call.1} parent=1 // pred_region
      _
    $region17: #{tpu_custom_call.1} parent=1 // pred_fallthru
      _
    %v18 = vld [vmem:[%s0] sm:$0xff]
    %v19 = vld [vmem:[%s2] sm:$0xff]
    %v20 = vld [vmem:[%s2 + $0x8] sm:$0xff]
    %v21 = vld [vmem:[%s2 + $0x10] sm:$0xff]
    %v22 = vld [vmem:[%s2 + $0x18] sm:$0xff]
    %v23 = vld [vmem:[%s2 + $0x20] sm:$0xff]
    %v24 = vld [vmem:[%s2 + $0x28] sm:$0xff]
    %v25 = vld [vmem:[%s2 + $0x30] sm:$0xff]
    %v26 = vld [vmem:[%s2 + $0x38] sm:$0xff]
    %v27 = vld [vmem:[%s2 + $0x40] sm:$0xff]
    %v28 = vld [vmem:[%s2 + $0x48] sm:$0xff]
    %v29 = vld [vmem:[%s2 + $0x50] sm:$0xff]
    %v30 = vld [vmem:[%s2 + $0x58] sm:$0xff]
    %vm31 = vcmask 785408
    %v33 = vsel %vm31, %v18, 0
    %35 = vmatprep.subr.mxu0 0.0
    %36 = vmatpush1.msra.mxu0 %v19
    %37 = vmatprep.subr.mxu0 0.0
    %38 = vmatpush1.msra.mxu0 %v20
    %39 = vmatprep.subr.mxu0 0.0
    %40 = vmatpush1.msra.mxu0 %v21
    %41 = vmatprep.subr.mxu0 0.0
    %42 = vmatpush1.msra.mxu0 %v22
    %43 = vmatprep.subr.mxu0 0.0
    %44 = vmatpush1.msra.mxu0 %v23
    %45 = vmatprep.subr.mxu0 0.0
    %46 = vmatpush1.msra.mxu0 %v24
    %47 = vmatprep.subr.mxu0 0.0
    %48 = vmatpush1.msra.mxu0 %v25
    %49 = vmatprep.subr.mxu0 0.0
    %50 = vmatpush1.msra.mxu0 %v26
    %51 = vmatprep.subr.mxu0 0.0
    %52 = vmatpush1.msra.mxu0 %v27
    %53 = vmatprep.subr.mxu0 0.0
    %54 = vmatpush1.msra.mxu0 %v28
    %55 = vmatprep.subr.mxu0 0.0
    %56 = vmatpush1.msra.mxu0 %v29
    %57 = vmatprep.subr.mxu0 0.0
    %58 = vmatpush1.msra.mxu0 %v30
    %59 = vmatprep.subr.mxu0 0.0
    %60 = vmatpush1.msra.mxu0 0.0
    %61 = vmatprep.subr.mxu0 0.0
    %62 = vmatpush1.msra.mxu0 0.0
    %63 = vmatprep.subr.mxu0 0.0
    %64 = vmatpush1.msra.mxu0 0.0
    %65 = vmatprep.subr.mxu0 0.0
    %66 = vmatpush1.msra.mxu0 0.0
    %67 = vmatprep.subr.mxu0 0.0
    %68 = vmatpush1.msra.mxu0 0.0
    %69 = vmatprep.subr.mxu0 0.0
    %70 = vmatpush1.msra.mxu0 0.0
    %71 = vmatprep.subr.mxu0 0.0
    %72 = vmatpush1.msra.mxu0 0.0
    %73 = vmatprep.subr.mxu0 0.0
    %74 = vmatpush1.msra.mxu0 0.0
    %75 = vmatprep.subr.mxu0 0.0
    %76 = vmatpush1.msra.mxu0 0.0
    %77 = vmatprep.subr.mxu0 0.0
    %78 = vmatpush1.msra.mxu0 0.0
    %79 = vmatprep.subr.mxu0 0.0
    %80 = vmatpush1.msra.mxu0 0.0
    %81 = vmatprep.subr.mxu0 0.0
    %82 = vmatpush1.msra.mxu0 0.0
    %83 = vmatprep.subr.mxu0 0.0
    %84 = vmatpush1.msra.mxu0 0.0
    %85 = vmatprep.subr.mxu0 0.0
    %86 = vmatpush1.msra.mxu0 0.0
    %87 = vmatprep.subr.mxu0 0.0
    %88 = vmatpush1.msra.mxu0 0.0
    %89 = vmatprep.subr.mxu0 0.0
    %90 = vmatpush1.msra.mxu0 0.0
    %91 = vmatprep.subr.mxu0 0.0
    %92 = vmatpush1.msra.mxu0 0.0
    %93 = vmatprep.subr.mxu0 0.0
    %94 = vmatpush1.msra.mxu0 0.0
    %95 = vmatprep.subr.mxu0 0.0
    %96 = vmatpush1.msra.mxu0 0.0
    %97 = vmatprep.subr.mxu0 0.0
    %98 = vmatpush1.msra.mxu0 0.0
    %99 = vmatprep.mubr.f32.mxu0 0.0
    %100 = vmatmul.mubr.f32.gmra.mrb[0].mxu0 %v33
    %v101 = vpop.f32.mrb[0].mxu0
    %v102 = vadd.f32 0.0, %v101
    %v103 = vpop.f32.mrb[0].mxu0
    %104 = vdwg.mxu0
    %v105 = vld [vmem:[%s1] sm:$0xff]
    %v106 = vld [vmem:[%s1 + $0x8] sm:$0xff]
    %v107 = vld [vmem:[%s3] sm:$0xff]
    %v108 = vld [vmem:[%s3 + $0x8] sm:$0xff]
    %v109 = vld [vmem:[%s3 + $0x10] sm:$0xff]
    %v110 = vld [vmem:[%s3 + $0x18] sm:$0xff]
    %v111 = vld [vmem:[%s3 + $0x20] sm:$0xff]
    %v112 = vld [vmem:[%s3 + $0x28] sm:$0xff]
    %v113 = vld [vmem:[%s3 + $0x30] sm:$0xff]
    %v114 = vld [vmem:[%s3 + $0x38] sm:$0xff]
    %v115 = vld [vmem:[%s3 + $0x40] sm:$0xff]
    %v116 = vld [vmem:[%s3 + $0x48] sm:$0xff]
    %v117 = vld [vmem:[%s3 + $0x50] sm:$0xff]
    %v118 = vld [vmem:[%s3 + $0x58] sm:$0xff]
    %v119 = vld [vmem:[%s3 + $0x60] sm:$0xff]
    %v120 = vld [vmem:[%s3 + $0x68] sm:$0xff]
    %v121 = vld [vmem:[%s3 + $0x70] sm:$0xff]
    %v122 = vld [vmem:[%s3 + $0x78] sm:$0xff]
    %v123 = vld [vmem:[%s3 + $0x80] sm:$0xff]
    %v124 = vld [vmem:[%s3 + $0x88] sm:$0xff]
    %v125 = vld [vmem:[%s3 + $0x90] sm:$0xff]
    %v126 = vld [vmem:[%s3 + $0x98] sm:$0xff]
    %vm127 = vcmask 261120
    %v129 = vsel %vm127, %v106, 0
    %131 = vmatprep.subr.mxu0 0.0
    %132 = vmatpush1.msra.mxu0 %v107
    %133 = vmatprep.subr.mxu0 0.0
    %134 = vmatpush1.msra.mxu0 %v108
    %135 = vmatprep.subr.mxu0 0.0
    %136 = vmatpush1.msra.mxu0 %v109
    %137 = vmatprep.subr.mxu0 0.0
    %138 = vmatpush1.msra.mxu0 %v110
    %139 = vmatprep.subr.mxu0 0.0
    %140 = vmatpush1.msra.mxu0 %v111
    %141 = vmatprep.subr.mxu0 0.0
    %142 = vmatpush1.msra.mxu0 %v112
    %143 = vmatprep.subr.mxu0 0.0
    %144 = vmatpush1.msra.mxu0 %v113
    %145 = vmatprep.subr.mxu0 0.0
    %146 = vmatpush1.msra.mxu0 %v114
    %147 = vmatprep.subr.mxu0 0.0
    %148 = vmatpush1.msra.mxu0 %v115
    %149 = vmatprep.subr.mxu0 0.0
    %150 = vmatpush1.msra.mxu0 %v116
    %151 = vmatprep.subr.mxu0 0.0
    %152 = vmatpush1.msra.mxu0 %v117
    %153 = vmatprep.subr.mxu0 0.0
    %154 = vmatpush1.msra.mxu0 %v118
    %155 = vmatprep.subr.mxu0 0.0
    %156 = vmatpush1.msra.mxu0 %v119
    %157 = vmatprep.subr.mxu0 0.0
    %158 = vmatpush1.msra.mxu0 %v120
    %159 = vmatprep.subr.mxu0 0.0
    %160 = vmatpush1.msra.mxu0 %v121
    %161 = vmatprep.subr.mxu0 0.0
    %162 = vmatpush1.msra.mxu0 %v122
    %163 = vmatprep.subr.mxu0 0.0
    %164 = vmatpush1.msra.mxu0 %v123
    %165 = vmatprep.subr.mxu0 0.0
    %166 = vmatpush1.msra.mxu0 %v124
    %167 = vmatprep.subr.mxu0 0.0
    %168 = vmatpush1.msra.mxu0 %v125
    %169 = vmatprep.subr.mxu0 0.0
    %170 = vmatpush1.msra.mxu0 %v126
    %171 = vmatprep.subr.mxu0 0.0
    %172 = vmatpush1.msra.mxu0 0.0
    %173 = vmatprep.subr.mxu0 0.0
    %174 = vmatpush1.msra.mxu0 0.0
    %175 = vmatprep.subr.mxu0 0.0
    %176 = vmatpush1.msra.mxu0 0.0
    %177 = vmatprep.subr.mxu0 0.0
    %178 = vmatpush1.msra.mxu0 0.0
    %179 = vmatprep.subr.mxu0 0.0
    %180 = vmatpush1.msra.mxu0 0.0
    %181 = vmatprep.subr.mxu0 0.0
    %182 = vmatpush1.msra.mxu0 0.0
    %183 = vmatprep.subr.mxu0 0.0
    %184 = vmatpush1.msra.mxu0 0.0
    %185 = vmatprep.subr.mxu0 0.0
    %186 = vmatpush1.msra.mxu0 0.0
    %187 = vmatprep.subr.mxu0 0.0
    %188 = vmatpush1.msra.mxu0 0.0
    %189 = vmatprep.subr.mxu0 0.0
    %190 = vmatpush1.msra.mxu0 0.0
    %191 = vmatprep.subr.mxu0 0.0
    %192 = vmatpush1.msra.mxu0 0.0
    %193 = vmatprep.subr.mxu0 0.0
    %194 = vmatpush1.msra.mxu0 0.0
    %195 = vmatprep.mubr.f32.mxu0 %v129
    %196 = vmatmul.mubr.f32.gmra.mrb[0].mxu0 %v105
    %v197 = vpop.f32.mrb[0].mxu0
    %v198 = vadd.f32 0.0, %v197
    %v199 = vpop.f32.mrb[0].mxu0
    %200 = vdwg.mxu0
    %202 = vrot.lane.b32.xlu0 %v198, 64
    %v203 = vpop.permute.xlu0 %202
    %vm205 = vcmask 523264
    %v206 = vsel %vm205, %v102, %v203
    %207 = vst [vmem:[#allocation2] sm:$0xff] %v206
    // Predicated region
    $region18: #{tpu_custom_call.1} parent=1 // pred_check
      _
    $region19: #{tpu_custom_call.1} parent=1 // pred_check_branch
      %209 = sbr.rel (0) target = $region21
    $region20: #{tpu_custom_call.1} parent=1 // pred_region
      %s211 = ssub.s32 128, 128
      %212 = vsyncadd [#allocation3], %s211
      %s214 = sshll.u32 [#allocation2], 4
      %s215 = int_to_ptr.vmem [resolvable:$true] %s214
      %217 = dma.vmem_to_hbm [thread:$0]  %s215, 128, %s4, [#allocation3]
    $region21: #{tpu_custom_call.1} parent=1 // pred_fallthru
      _
    // Predicated region
    $region22: #{tpu_custom_call.1} parent=1 // pred_check
      _
    $region23: #{tpu_custom_call.1} parent=1 // pred_check_branch
      %219 = sbr.rel (0) target = $region25
    $region24: #{tpu_custom_call.1} parent=1 // pred_region
      %220 = dma.done [#allocation3], 128
    $region25: #{tpu_custom_call.1} parent=1 // pred_fallthru
      _
    %221 = vsyncpa [#allocation3], 1

</llo_original>
